<compile_context>
chip_gen: v7x
topology: tpu7x:2x2x1
jax: 0.10.0
libtpu: 0.0.40
codegen_flags: <defaults>
</compile_context>

<pallas_src>
import functools

import jax
import jax.numpy as jnp
from jax.experimental import pallas as pl
from jax.experimental.pallas import tpu as pltpu


def _convmodel_kernel(w_ref, b_ref, x_ref, off_ref, o_ref, *,
                      K, C_in, C_out, L, pad, roll_sign):
    # w_ref:   (C_out*C_in*K,) f32 SMEM  (conv weight, read as scalars)
    # b_ref:   (C_out,)        f32 SMEM  (conv bias)
    # x_ref:   (tn, C_in*L)        VMEM  (lane-dense input tile)
    # off_ref: (tn, L)             VMEM  (offset tile)
    # o_ref:   (tn, C_out*L)       VMEM  (lane-dense output tile)
    tn = x_ref.shape[0]
    f32 = jnp.float32

    # log(offset): EUP slot, effectively free in a memory-bound kernel.
    log_off = jnp.log(off_ref[...].astype(f32))

    # Hoisted per-tap boundary masks, shared across input/output channels.
    masks = {}
    if roll_sign != 0:
        lane = jax.lax.broadcasted_iota(jnp.int32, (tn, L), 1)
        for j in range(K):
            s = j - pad
            if s != 0 and abs(s) < L:
                masks[s] = (lane >= -s) & (lane < L - s)

    # Accumulators init: bias + log(offset), broadcast over output channels.
    accs = [log_off + b_ref[o] for o in range(C_out)]

    # Fused shift + accumulate: pure VPU FMAs with scalar SMEM weights (the
    # contraction depth C_in*K is far too small to be worth the MXU).
    for c in range(C_in):
        x_c = x_ref[:, c * L:(c + 1) * L].astype(f32)        # (tn, L) lane window
        for j in range(K):
            s = j - pad                                      # static shift
            if abs(s) >= L:
                continue                                     # contributes only zeros
            if s == 0:
                xs = x_c
            elif roll_sign != 0:
                # XLU lane rotate (off the VPU/ld/st critical path) + fused mask.
                rolled = pltpu.roll(x_c, shift=(-s * roll_sign) % L, axis=1)
                xs = jnp.where(masks[s], rolled, 0.0)
            else:
                # Fallback for lane-unaligned L: slice + zero fill.
                if s > 0:
                    xs = jnp.concatenate(
                        [x_c[:, s:], jnp.zeros((tn, s), f32)], axis=1)
                else:
                    xs = jnp.concatenate(
                        [jnp.zeros((tn, -s), f32), x_c[:, :L + s]], axis=1)
            for o in range(C_out):
                w = w_ref[o * C_in * K + c * K + j]          # scalar-operand FMA
                accs[o] = accs[o] + xs * w

    for o in range(C_out):
        o_ref[:, o * L:(o + 1) * L] = accs[o].astype(o_ref.dtype)


@functools.lru_cache(maxsize=1)
def _roll_shift_sign():
    """+1 if pltpu.roll follows jnp.roll semantics (out[i] = x[i - shift]),
    -1 if inverted, 0 if roll is unavailable (use the slice/concat fallback)."""
    def probe(x_ref, o_ref):
        o_ref[...] = pltpu.roll(x_ref[...], shift=1, axis=1)
    try:
        x = jax.lax.broadcasted_iota(jnp.float32, (8, 128), 1)
        y = pl.pallas_call(
            probe, out_shape=jax.ShapeDtypeStruct((8, 128), jnp.float32))(x)
        y0, y1 = float(y[0, 0]), float(y[0, 1])
        if y0 == 127.0 and y1 == 0.0:
            return 1
        if y0 == 1.0:
            return -1
    except Exception:
        pass
    return 0


def _vmem_capacity_bytes():
    try:
        return int(pltpu.get_tpu_info().vmem_capacity_bytes)
    except Exception:
        return 64 << 20          # conservative default (v7x per-core VMEM)


def _pick_batch_tile(N, C_in, C_out, L, in_item, off_item, out_item, vmem_cap):
    """Batch tile (multiple of 8) sized against this generation's VMEM, keeping
    >= 2 grid steps when the batch allows (pipelining + v7x two-TC sharding)."""
    budget = min((vmem_cap * 2) // 5, 48 << 20)
    per_row = ((C_in * in_item + off_item) * L * 2        # inputs, double-buffered
               + C_out * L * out_item * 2                 # output, double-buffered
               + (C_out + 4) * L * 4)                     # in-kernel f32 temporaries
    tn_cap = max(8, (budget // max(per_row, 1)) // 8 * 8)

    n_pad = ((N + 7) // 8) * 8          # pad batch only up to a sublane multiple
    if n_pad >= 16:                     # keep at least 2 grid steps
        tn_cap = min(tn_cap, max(8, (n_pad // 2) // 8 * 8))
    tn = min(tn_cap, n_pad)
    while tn > 8 and n_pad % tn != 0:   # tn must divide the (padded) batch
        tn -= 8
    return tn, n_pad


def convmodel_forward(src, offset, weight, bias):
    """src: (N, C_in, L); offset: (N, 1, L) or (N, L), strictly positive;
    weight: (C_out, C_in, K) with K odd; bias: (C_out,).
    Returns conv1d(src, same, zero pad) + log(offset), dim 1 squeezed iff C_out==1."""
    N, C_in, L = src.shape
    C_out, C_in_w, K = weight.shape
    assert C_in_w == C_in and K % 2 == 1
    pad = K // 2
    assert offset.size == N * L, "offset must have shape (N, 1, L) or (N, L)"

    out_dtype = src.dtype

    # Lane-dense layouts: free reshapes of contiguous (N, C, L) data.
    x_flat = src.reshape(N, C_in * L)
    off2d = offset.reshape(N, L)

    vmem_cap = _vmem_capacity_bytes()
    tn, n_pad = _pick_batch_tile(
        N, C_in, C_out, L,
        jnp.dtype(src.dtype).itemsize, jnp.dtype(off2d.dtype).itemsize,
        jnp.dtype(out_dtype).itemsize, vmem_cap)

    if n_pad != N:
        # Pad at most 7 batch rows: zeros for src, ones for offset (log(1)=0).
        x_flat = jnp.pad(x_flat, ((0, n_pad - N), (0, 0)))
        off2d = jnp.pad(off2d, ((0, n_pad - N), (0, 0)), constant_values=1)

    roll_sign = _roll_shift_sign() if (L % 128 == 0) else 0

    w_flat = weight.reshape(-1).astype(jnp.float32)
    b_flat = bias.reshape(-1).astype(jnp.float32)

    kernel = functools.partial(_convmodel_kernel, K=K, C_in=C_in, C_out=C_out,
                               L=L, pad=pad, roll_sign=roll_sign)

    smem = pl.BlockSpec(memory_space=pltpu.MemorySpace.SMEM)
    out = pl.pallas_call(
        kernel,
        grid=(n_pad // tn,),
        in_specs=[
            smem,                                             # weight (SMEM scalars)
            smem,                                             # bias   (SMEM scalars)
            pl.BlockSpec((tn, C_in * L), lambda i: (i, 0)),   # src tile (lane-dense)
            pl.BlockSpec((tn, L), lambda i: (i, 0)),          # offset tile
        ],
        out_specs=pl.BlockSpec((tn, C_out * L), lambda i: (i, 0)),
        out_shape=jax.ShapeDtypeStruct((n_pad, C_out * L), out_dtype),
        compiler_params=pltpu.CompilerParams(
            dimension_semantics=("parallel",),
            vmem_limit_bytes=min(vmem_cap * 3 // 4, 96 << 20)),
    )(w_flat, b_flat, x_flat, off2d)

    out = out[:N]
    if C_out == 1:
        return out.reshape(N, L)            # torch .squeeze(1)
    return out.reshape(N, C_out, L)


def _reference(src, offset, weight, bias):
    # Pure-JAX reference (f32-accurate conv) for a sanity check.
    out = jax.lax.conv_general_dilated(
        src.astype(jnp.float32), weight.astype(jnp.float32),
        window_strides=(1,), padding=[(weight.shape[-1] // 2,) * 2],
        dimension_numbers=("NCH", "OIH", "NCH"),
        precision=jax.lax.Precision.HIGHEST,
    ) + bias.reshape(1, -1, 1)
    out = out + jnp.log(
        jnp.broadcast_to(offset.reshape(src.shape[0], 1, -1), out.shape))
    if out.shape[1] == 1:
        out = out.reshape(out.shape[0], out.shape[2])
    return out


if __name__ == "__main__":
    key = jax.random.PRNGKey(0)

    def run_case(case_key, N, ninp, out_ch, L, K):
        k_src, k_off, k_w, k_b = jax.random.split(case_key, 4)
        src = jax.random.normal(k_src, (N, ninp, L), dtype=jnp.float32)
        # offset must be positive (it is log'd); broadcastable to (N, out, L).
        offset = jax.random.uniform(k_off, (N, 1, L), minval=0.5, maxval=2.0,
                                    dtype=jnp.float32)
        # Convmodel.init_weights: weight ~ U(-0.1/ninp, 0.1/ninp);
        # bias keeps torch's default U(+-1/sqrt(fan_in)).
        initrange = 0.1 / ninp
        weight = jax.random.uniform(k_w, (out_ch, ninp, K),
                                    minval=-initrange, maxval=initrange,
                                    dtype=jnp.float32)
        bound = 1.0 / (ninp * K) ** 0.5
        bias = jax.random.uniform(k_b, (out_ch,), minval=-bound, maxval=bound,
                                  dtype=jnp.float32)

        result = convmodel_forward(src, offset, weight, bias)
        jax.block_until_ready(result)
        ref = _reference(src, offset, weight, bias)
        assert result.shape == ref.shape, (result.shape, ref.shape)
        assert jnp.allclose(result, ref, atol=1e-4, rtol=1e-5)
        return result

    k1, k2 = jax.random.split(key)
    # Small shape matching the module (out=1, so .squeeze(1) drops the channel dim).
    run_case(k1, N=2, ninp=4, out_ch=1, L=16, K=3)
    # Lane-aligned shape: exercises the XLU-roll path, multi-step grid, C_out > 1.
    run_case(k2, N=16, ninp=4, out_ch=2, L=128, K=5)

    print("KERNEL_OK")
</pallas_src>

<mosaic_0001>
module attributes {stable_mosaic.version = 11 : i64} {
  func.func @_convmodel_kernel(%arg0: i32, %arg1: memref<12xf32, #tpu.memory_space<smem>>, %arg2: memref<1xf32, #tpu.memory_space<smem>>, %arg3: memref<8x64xf32, #tpu.memory_space<vmem>>, %arg4: memref<8x16xf32, #tpu.memory_space<vmem>>, %arg5: memref<8x16xf32, #tpu.memory_space<vmem>>) attributes {dimension_semantics = [#tpu.dimension_semantics<parallel>], iteration_bounds = array<i64: 1>, scalar_prefetch = 0 : i64, scratch_operands = 0 : i64, tpu.core_type = #tpu.core_type<tc>, window_params = [{transform_indices = @transform_0, window_bounds = array<i64: 12>}, {transform_indices = @transform_1, window_bounds = array<i64: 1>}, {transform_indices = @transform_2, window_bounds = array<i64: 8, 64>}, {transform_indices = @transform_3, window_bounds = array<i64: 8, 16>}, {transform_indices = @transform_4, window_bounds = array<i64: 8, 16>}]} {
    %c0 = arith.constant 0 : index
    %c0_0 = arith.constant 0 : index
    %0 = vector.load %arg4[%c0, %c0_0] : memref<8x16xf32, #tpu.memory_space<vmem>>, vector<8x16xf32>
    %1 = math.log %0 : vector<8x16xf32>
    %c0_1 = arith.constant 0 : index
    %2 = memref.load %arg2[%c0_1] : memref<1xf32, #tpu.memory_space<smem>>
    %3 = vector.broadcast %2 : f32 to vector<8x16xf32>
    %4 = arith.addf %1, %3 : vector<8x16xf32>
    %c0_2 = arith.constant 0 : index
    %c0_3 = arith.constant 0 : index
    %5 = vector.load %arg3[%c0_2, %c0_3] : memref<8x64xf32, #tpu.memory_space<vmem>>, vector<8x16xf32>
    %cst = arith.constant 0.000000e+00 : f32
    %6 = vector.broadcast %cst : f32 to vector<8x1xf32>
    %7 = vector.extract_strided_slice %5 {offsets = [0, 0], sizes = [8, 15], strides = [1, 1]} : vector<8x16xf32> to vector<8x15xf32>
    %8 = tpu.concatenate %6, %7 in 1 : vector<8x1xf32>, vector<8x15xf32> -> vector<8x16xf32>
    %c0_4 = arith.constant 0 : index
    %9 = memref.load %arg1[%c0_4] : memref<12xf32, #tpu.memory_space<smem>>
    %10 = vector.broadcast %9 : f32 to vector<8x16xf32>
    %11 = arith.mulf %8, %10 : vector<8x16xf32>
    %12 = arith.addf %4, %11 : vector<8x16xf32>
    %c1 = arith.constant 1 : index
    %13 = memref.load %arg1[%c1] : memref<12xf32, #tpu.memory_space<smem>>
    %14 = vector.broadcast %13 : f32 to vector<8x16xf32>
    %15 = arith.mulf %5, %14 : vector<8x16xf32>
    %16 = arith.addf %12, %15 : vector<8x16xf32>
    %17 = vector.extract_strided_slice %5 {offsets = [0, 1], sizes = [8, 15], strides = [1, 1]} : vector<8x16xf32> to vector<8x15xf32>
    %cst_5 = arith.constant 0.000000e+00 : f32
    %18 = vector.broadcast %cst_5 : f32 to vector<8x1xf32>
    %19 = tpu.concatenate %17, %18 in 1 : vector<8x15xf32>, vector<8x1xf32> -> vector<8x16xf32>
    %c2 = arith.constant 2 : index
    %20 = memref.load %arg1[%c2] : memref<12xf32, #tpu.memory_space<smem>>
    %21 = vector.broadcast %20 : f32 to vector<8x16xf32>
    %22 = arith.mulf %19, %21 : vector<8x16xf32>
    %23 = arith.addf %16, %22 : vector<8x16xf32>
    %c0_6 = arith.constant 0 : index
    %c16 = arith.constant 16 : index
    %24 = vector.load %arg3[%c0_6, %c16] : memref<8x64xf32, #tpu.memory_space<vmem>>, vector<8x16xf32>
    %cst_7 = arith.constant 0.000000e+00 : f32
    %25 = vector.broadcast %cst_7 : f32 to vector<8x1xf32>
    %26 = vector.extract_strided_slice %24 {offsets = [0, 0], sizes = [8, 15], strides = [1, 1]} : vector<8x16xf32> to vector<8x15xf32>
    %27 = tpu.concatenate %25, %26 in 1 : vector<8x1xf32>, vector<8x15xf32> -> vector<8x16xf32>
    %c3 = arith.constant 3 : index
    %28 = memref.load %arg1[%c3] : memref<12xf32, #tpu.memory_space<smem>>
    %29 = vector.broadcast %28 : f32 to vector<8x16xf32>
    %30 = arith.mulf %27, %29 : vector<8x16xf32>
    %31 = arith.addf %23, %30 : vector<8x16xf32>
    %c4 = arith.constant 4 : index
    %32 = memref.load %arg1[%c4] : memref<12xf32, #tpu.memory_space<smem>>
    %33 = vector.broadcast %32 : f32 to vector<8x16xf32>
    %34 = arith.mulf %24, %33 : vector<8x16xf32>
    %35 = arith.addf %31, %34 : vector<8x16xf32>
    %36 = vector.extract_strided_slice %24 {offsets = [0, 1], sizes = [8, 15], strides = [1, 1]} : vector<8x16xf32> to vector<8x15xf32>
    %cst_8 = arith.constant 0.000000e+00 : f32
    %37 = vector.broadcast %cst_8 : f32 to vector<8x1xf32>
    %38 = tpu.concatenate %36, %37 in 1 : vector<8x15xf32>, vector<8x1xf32> -> vector<8x16xf32>
    %c5 = arith.constant 5 : index
    %39 = memref.load %arg1[%c5] : memref<12xf32, #tpu.memory_space<smem>>
    %40 = vector.broadcast %39 : f32 to vector<8x16xf32>
    %41 = arith.mulf %38, %40 : vector<8x16xf32>
    %42 = arith.addf %35, %41 : vector<8x16xf32>
    %c0_9 = arith.constant 0 : index
    %c32 = arith.constant 32 : index
    %43 = vector.load %arg3[%c0_9, %c32] : memref<8x64xf32, #tpu.memory_space<vmem>>, vector<8x16xf32>
    %cst_10 = arith.constant 0.000000e+00 : f32
    %44 = vector.broadcast %cst_10 : f32 to vector<8x1xf32>
    %45 = vector.extract_strided_slice %43 {offsets = [0, 0], sizes = [8, 15], strides = [1, 1]} : vector<8x16xf32> to vector<8x15xf32>
    %46 = tpu.concatenate %44, %45 in 1 : vector<8x1xf32>, vector<8x15xf32> -> vector<8x16xf32>
    %c6 = arith.constant 6 : index
    %47 = memref.load %arg1[%c6] : memref<12xf32, #tpu.memory_space<smem>>
    %48 = vector.broadcast %47 : f32 to vector<8x16xf32>
    %49 = arith.mulf %46, %48 : vector<8x16xf32>
    %50 = arith.addf %42, %49 : vector<8x16xf32>
    %c7 = arith.constant 7 : index
    %51 = memref.load %arg1[%c7] : memref<12xf32, #tpu.memory_space<smem>>
    %52 = vector.broadcast %51 : f32 to vector<8x16xf32>
    %53 = arith.mulf %43, %52 : vector<8x16xf32>
    %54 = arith.addf %50, %53 : vector<8x16xf32>
    %55 = vector.extract_strided_slice %43 {offsets = [0, 1], sizes = [8, 15], strides = [1, 1]} : vector<8x16xf32> to vector<8x15xf32>
    %cst_11 = arith.constant 0.000000e+00 : f32
    %56 = vector.broadcast %cst_11 : f32 to vector<8x1xf32>
    %57 = tpu.concatenate %55, %56 in 1 : vector<8x15xf32>, vector<8x1xf32> -> vector<8x16xf32>
    %c8 = arith.constant 8 : index
    %58 = memref.load %arg1[%c8] : memref<12xf32, #tpu.memory_space<smem>>
    %59 = vector.broadcast %58 : f32 to vector<8x16xf32>
    %60 = arith.mulf %57, %59 : vector<8x16xf32>
    %61 = arith.addf %54, %60 : vector<8x16xf32>
    %c0_12 = arith.constant 0 : index
    %c48 = arith.constant 48 : index
    %62 = vector.load %arg3[%c0_12, %c48] : memref<8x64xf32, #tpu.memory_space<vmem>>, vector<8x16xf32>
    %cst_13 = arith.constant 0.000000e+00 : f32
    %63 = vector.broadcast %cst_13 : f32 to vector<8x1xf32>
    %64 = vector.extract_strided_slice %62 {offsets = [0, 0], sizes = [8, 15], strides = [1, 1]} : vector<8x16xf32> to vector<8x15xf32>
    %65 = tpu.concatenate %63, %64 in 1 : vector<8x1xf32>, vector<8x15xf32> -> vector<8x16xf32>
    %c9 = arith.constant 9 : index
    %66 = memref.load %arg1[%c9] : memref<12xf32, #tpu.memory_space<smem>>
    %67 = vector.broadcast %66 : f32 to vector<8x16xf32>
    %68 = arith.mulf %65, %67 : vector<8x16xf32>
    %69 = arith.addf %61, %68 : vector<8x16xf32>
    %c10 = arith.constant 10 : index
    %70 = memref.load %arg1[%c10] : memref<12xf32, #tpu.memory_space<smem>>
    %71 = vector.broadcast %70 : f32 to vector<8x16xf32>
    %72 = arith.mulf %62, %71 : vector<8x16xf32>
    %73 = arith.addf %69, %72 : vector<8x16xf32>
    %74 = vector.extract_strided_slice %62 {offsets = [0, 1], sizes = [8, 15], strides = [1, 1]} : vector<8x16xf32> to vector<8x15xf32>
    %cst_14 = arith.constant 0.000000e+00 : f32
    %75 = vector.broadcast %cst_14 : f32 to vector<8x1xf32>
    %76 = tpu.concatenate %74, %75 in 1 : vector<8x15xf32>, vector<8x1xf32> -> vector<8x16xf32>
    %c11 = arith.constant 11 : index
    %77 = memref.load %arg1[%c11] : memref<12xf32, #tpu.memory_space<smem>>
    %78 = vector.broadcast %77 : f32 to vector<8x16xf32>
    %79 = arith.mulf %76, %78 : vector<8x16xf32>
    %80 = arith.addf %73, %79 : vector<8x16xf32>
    %c0_15 = arith.constant 0 : index
    %c0_16 = arith.constant 0 : index
    %81 = vector.load %arg5[%c0_15, %c0_16] : memref<8x16xf32, #tpu.memory_space<vmem>>, vector<8x16xf32>
    tpu.vector_store %arg5[%c0_15, %c0_16], %80 {strides = array<i32>} : memref<8x16xf32, #tpu.memory_space<vmem>>, vector<8x16xf32>,
    return
  }
  func.func @transform_0(%arg0: i32) -> i32 {
    %c0_i32 = arith.constant 0 : i32
    %c0_i32_0 = arith.constant 0 : i32
    return %c0_i32 : i32
  }
  func.func @transform_1(%arg0: i32) -> i32 {
    %c0_i32 = arith.constant 0 : i32
    %c0_i32_0 = arith.constant 0 : i32
    return %c0_i32 : i32
  }
  func.func @transform_2(%arg0: i32) -> (i32, i32) {
    %c0_i32 = arith.constant 0 : i32
    %c0_i32_0 = arith.constant 0 : i32
    return %arg0, %c0_i32 : i32, i32
  }
  func.func @transform_3(%arg0: i32) -> (i32, i32) {
    %c0_i32 = arith.constant 0 : i32
    %c0_i32_0 = arith.constant 0 : i32
    return %arg0, %c0_i32 : i32, i32
  }
  func.func @transform_4(%arg0: i32) -> (i32, i32) {
    %c0_i32 = arith.constant 0 : i32
    %c0_i32_0 = arith.constant 0 : i32
    return %arg0, %c0_i32 : i32, i32
  }
}

</mosaic_0001>

<llo_original>
// kernel: tpu_custom_call.1
$region0: #{tpu_custom_call.1}
  #allocation0 [shape = 'u32[]', space=smem, size = 0x4, offset = 0x4, fixed_abs, tag = 'smem constant byte address 0x4 - core index']
  #allocation1 [shape = 'u32[144,128]{1,0:T(1,128)}', space=vmem, size = 0x12000, scoped, tag = 'internal scratch']
  #allocation2 [shape = 'f32[1]{0:T(128)S(6)}', space=smem, size = 0x200, scoped, tag = 'scoped memory for tpu_custom_call.1']
  %s0 = inlined_call_operand.vmem [shape: f32[12], index: 0, kind: input, shape index: {}]
  %s1 = inlined_call_operand.<no memory space> [shape: f32[1], index: 1, kind: input, shape index: {}]
  %s2 = inlined_call_operand.hbm [shape: f32[8,64], index: 2, kind: input, shape index: {}]
  %s3 = inlined_call_operand.vmem [shape: f32[8,16], index: 3, kind: input, shape index: {}]
  %s4 = inlined_call_operand.hbm [shape: f32[8,16], index: 4, kind: output, shape index: {}]
  %s5 = sld [smem:[#allocation0]]
  $region34: #{tpu_custom_call.1} parent=0
    _
  %s7 = ssub.s32 1, %s5
  %s8 = scalar_select 0, %s7, %s5
  %9 = sst [smem:[#allocation2]] %s1
  $region1: #{tpu_custom_call.1} parent=0
    #allocation3 [shape = 'u8[512]{0}', space=smem, size = 0x200, scoped, tag = 'input window, operand 0, single buffered']
    #allocation4 [shape = 's32[1]{0}', space=sflag, size = 0x4, scoped, tag = 'scoped memory for tpu_custom_call.1']
    #allocation5 [shape = 's32[1]{0}', space=sflag, size = 0x4, scoped, tag = 'scoped memory for tpu_custom_call.1']
    #allocation6 [shape = 's32[1]{0}', space=sflag, size = 0x4, scoped, tag = 'scoped memory for tpu_custom_call.1']
    #allocation7 [shape = 'u8[4096]{0}', space=vmem, size = 0x1000, scoped, tag = 'input window, operand 2, single buffered']
    #allocation8 [shape = 'u8[4096]{0}', space=vmem, size = 0x1000, scoped, tag = 'output window, operand 0, single buffered']
    %10 = vsyncpa [#allocation6], 0
    %11 = vsyncpa [#allocation4], 0
    %12 = vsyncpa [#allocation5], 0
    // Predicated region
    $region2: #{tpu_custom_call.1} parent=1 // pred_check
      _
    $region3: #{tpu_custom_call.1} parent=1 // pred_check_branch
      %14 = sbr.rel (0) target = $region5
    $region4: #{tpu_custom_call.1} parent=1 // pred_region
      %s16 = ssub.s32 16, 16
      %17 = vsyncadd [#allocation6], %s16
      %s19 = sshll.u32 %s0, 4
      %s20 = int_to_ptr.vmem [resolvable:$true] %s19
      %22 = dma.vmem_to_smem %s20, 16, [#allocation3], [#allocation6]
    $region5: #{tpu_custom_call.1} parent=1 // pred_fallthru
      _
    // Predicated region
    $region6: #{tpu_custom_call.1} parent=1 // pred_check
      _
    $region7: #{tpu_custom_call.1} parent=1 // pred_check_branch
      %24 = sbr.rel (0) target = $region9
    $region8: #{tpu_custom_call.1} parent=1 // pred_region
      _
    $region9: #{tpu_custom_call.1} parent=1 // pred_fallthru
      _
    // Predicated region
    $region10: #{tpu_custom_call.1} parent=1 // pred_check
      _
    $region11: #{tpu_custom_call.1} parent=1 // pred_check_branch
      %26 = sbr.rel (0) target = $region13
    $region12: #{tpu_custom_call.1} parent=1 // pred_region
      %s28 = ssub.s32 128, 128
      %29 = vsyncadd [#allocation4], %s28
      %s31 = sshll.u32 [#allocation7], 4
      %s32 = int_to_ptr.vmem [resolvable:$true] %s31
      %34 = dma.hbm_to_vmem [thread:$0]  %s2, 128, %s32, [#allocation4]
    $region13: #{tpu_custom_call.1} parent=1 // pred_fallthru
      _
    // Predicated region
    $region14: #{tpu_custom_call.1} parent=1 // pred_check
      _
    $region15: #{tpu_custom_call.1} parent=1 // pred_check_branch
      %36 = sbr.rel (0) target = $region17
    $region16: #{tpu_custom_call.1} parent=1 // pred_region
      _
    $region17: #{tpu_custom_call.1} parent=1 // pred_fallthru
      _
    // Predicated region
    $region18: #{tpu_custom_call.1} parent=1 // pred_check
      _
    $region19: #{tpu_custom_call.1} parent=1 // pred_check_branch
      %38 = sbr.rel (0) target = $region21
    $region20: #{tpu_custom_call.1} parent=1 // pred_region
      %39 = dma.done [#allocation6], 16
    $region21: #{tpu_custom_call.1} parent=1 // pred_fallthru
      _
    // Predicated region
    $region22: #{tpu_custom_call.1} parent=1 // pred_check
      _
    $region23: #{tpu_custom_call.1} parent=1 // pred_check_branch
      %41 = sbr.rel (0) target = $region25
    $region24: #{tpu_custom_call.1} parent=1 // pred_region
      %42 = dma.done [#allocation4], 128
    $region25: #{tpu_custom_call.1} parent=1 // pred_fallthru
      _
    %43 = sfence
    %v44 = vld [vmem:[%s3] sm:$0xff]
    %v45 = vlog2.pop %v44
    %v46 = vmul.f32 %v45, 0.6931472
    %s47 = sld [smem:[#allocation2]]
    %v48 = vstv %s47
    %v49 = vadd.f32 %v46, %v48
    %v50 = vld [vmem:[#allocation7] sm:$0xff]
    %52 = vrot.lane.b32.xlu0 %v50, 1
    %v53 = vpop.permute.xlu0 %52
    %vm55 = vcmask 7168
    %v56 = vsel %vm55, 0.0, %v53
    %s57 = sld [smem:[#allocation3]]
    %v58 = vstv %s57
    %v59 = vmul.f32 %v56, %v58
    %v60 = vadd.f32 %v49, %v59
    %s61 = sld [smem:[#allocation3 + $0x1]]
    %v62 = vstv %s61
    %v63 = vmul.f32 %v50, %v62
    %v64 = vadd.f32 %v60, %v63
    %65 = vrot.lane.b32.xlu0 %v50, 127
    %v66 = vpop.permute.xlu0 %65
    %vm68 = vcmask 121856
    %v69 = vsel %vm68, %v66, 0.0
    %s70 = sld [smem:[#allocation3 + $0x2]]
    %v71 = vstv %s70
    %v72 = vmul.f32 %v69, %v71
    %v73 = vadd.f32 %v64, %v72
    %74 = vrot.lane.b32.xlu0 %v50, 113
    %v75 = vpop.permute.xlu0 %74
    %v77 = vsel %vm55, 0.0, %v75
    %s78 = sld [smem:[#allocation3 + $0x3]]
    %v79 = vstv %s78
    %v80 = vmul.f32 %v77, %v79
    %v81 = vadd.f32 %v73, %v80
    %s82 = sld [smem:[#allocation3 + $0x4]]
    %v83 = vstv %s82
    %v84 = vmul.f32 %v50, %v83
    %86 = vrot.lane.b32.xlu0 %v84, 112
    %v87 = vpop.permute.xlu0 %86
    %v89 = vadd.f32 %v81, %v87
    %90 = vrot.lane.b32.xlu0 %v50, 111
    %v91 = vpop.permute.xlu0 %90
    %v93 = vsel %vm68, %v91, 0.0
    %s94 = sld [smem:[#allocation3 + $0x5]]
    %v95 = vstv %s94
    %v96 = vmul.f32 %v93, %v95
    %v97 = vadd.f32 %v89, %v96
    %98 = vrot.lane.b32.xlu0 %v50, 97
    %v99 = vpop.permute.xlu0 %98
    %v101 = vsel %vm55, 0.0, %v99
    %s102 = sld [smem:[#allocation3 + $0x6]]
    %v103 = vstv %s102
    %v104 = vmul.f32 %v101, %v103
    %v105 = vadd.f32 %v97, %v104
    %s106 = sld [smem:[#allocation3 + $0x7]]
    %v107 = vstv %s106
    %v108 = vmul.f32 %v50, %v107
    %110 = vrot.lane.b32.xlu0 %v108, 96
    %v111 = vpop.permute.xlu0 %110
    %v113 = vadd.f32 %v105, %v111
    %114 = vrot.lane.b32.xlu0 %v50, 95
    %v115 = vpop.permute.xlu0 %114
    %v117 = vsel %vm68, %v115, 0.0
    %s118 = sld [smem:[#allocation3 + $0x8]]
    %v119 = vstv %s118
    %v120 = vmul.f32 %v117, %v119
    %v121 = vadd.f32 %v113, %v120
    %122 = vrot.lane.b32.xlu0 %v50, 81
    %v123 = vpop.permute.xlu0 %122
    %v125 = vsel %vm55, 0.0, %v123
    %s126 = sld [smem:[#allocation3 + $0x9]]
    %v127 = vstv %s126
    %v128 = vmul.f32 %v125, %v127
    %v129 = vadd.f32 %v121, %v128
    %s130 = sld [smem:[#allocation3 + $0xa]]
    %v131 = vstv %s130
    %v132 = vmul.f32 %v50, %v131
    %134 = vrot.lane.b32.xlu0 %v132, 80
    %v135 = vpop.permute.xlu0 %134
    %v137 = vadd.f32 %v129, %v135
    %138 = vrot.lane.b32.xlu0 %v50, 79
    %v139 = vpop.permute.xlu0 %138
    %v141 = vsel %vm68, %v139, 0.0
    %s142 = sld [smem:[#allocation3 + $0xb]]
    %v143 = vstv %s142
    %v144 = vmul.f32 %v141, %v143
    %v145 = vadd.f32 %v137, %v144
    %vm146 = vcmask 130048
    %147 = vst.msk [vmem:[#allocation8] sm:$0xff] %vm146, %v145
    // Predicated region
    $region26: #{tpu_custom_call.1} parent=1 // pred_check
      _
    $region27: #{tpu_custom_call.1} parent=1 // pred_check_branch
      %149 = sbr.rel (0) target = $region29
    $region28: #{tpu_custom_call.1} parent=1 // pred_region
      %s151 = ssub.s32 128, 128
      %152 = vsyncadd [#allocation5], %s151
      %s154 = sshll.u32 [#allocation8], 4
      %s155 = int_to_ptr.vmem [resolvable:$true] %s154
      %157 = dma.vmem_to_hbm [thread:$0]  %s155, 128, %s4, [#allocation5]
    $region29: #{tpu_custom_call.1} parent=1 // pred_fallthru
      _
    // Predicated region
    $region30: #{tpu_custom_call.1} parent=1 // pred_check
      _
    $region31: #{tpu_custom_call.1} parent=1 // pred_check_branch
      %159 = sbr.rel (0) target = $region33
    $region32: #{tpu_custom_call.1} parent=1 // pred_region
      %160 = dma.done [#allocation5], 128
    $region33: #{tpu_custom_call.1} parent=1 // pred_fallthru
      _
    %161 = vsyncpa [#allocation4], 1
    %162 = vsyncpa [#allocation5], 1
    %163 = vsyncpa [#allocation6], 1

</llo_original>
